<compile_context>
chip_gen: v6e
topology: v6e:2x2x1
jax: 0.10.0
libtpu: 0.0.40
codegen_flags: <defaults>
</compile_context>

<pallas_src>
import jax
import jax.numpy as jnp
import numpy as np
from jax.experimental import pallas as pl
from jax.experimental.pallas import tpu as pltpu

BN_EPS = 1e-5

# ----- synthetic ontology graph (replaces `graph` / `args`) -----------------
NUM_GENES = 8          # gene_dim  = len(gene_id_mapping)
FEATURE_DIM = 4        # args.feature_dim
HIDDEN = 8             # args.genotype_hiddens (term_dim for every term)
BATCH = 4

TERM_DIRECT_GENE_MAP = {"T1": (0, 1, 2), "T2": (3, 4, 5), "T3": (6, 7)}
TERM_CHILDREN = {"T1": (), "T2": (), "T3": ("T1", "T2"), "ROOT": ("T3",)}
TERM_LAYERS = (("T1", "T2"), ("T3",), ("ROOT",))   # leaves -> root order
ROOT = "ROOT"

TERM_ORDER = tuple(t for layer in TERM_LAYERS for t in layer)   # T1,T2,T3,ROOT
TERM_INDEX = {t: i for i, t in enumerate(TERM_ORDER)}
NT = len(TERM_ORDER)
B_PAD = max(8, ((BATCH + 7) // 8) * 8)          # pad batch to sublane granule

# "state" layout fed to every per-layer matmul (contraction width of all dots):
#   columns [0, G)                 : normalized gene activations
#   columns [G + t*H, G + (t+1)*H) : hidden embedding of term TERM_ORDER[t]
K = NUM_GENES + NT * HIDDEN                     # 40

# ----- column layout of the packed weight+bias slab (row K is the bias row) --
COL_GENE = 0
_col = NUM_GENES
COL_W1, COL_W2 = [], []
for _layer in TERM_LAYERS:
    COL_W1.append(_col); _col += len(_layer) * HIDDEN
    COL_W2.append(_col); _col += len(_layer)
COL_FINAL = _col
C_USED = COL_FINAL + 1                          # 45
SLAB_COLS = 128                                 # lane-dense
SLAB_ROWS = ((K + 1 + 7) // 8) * 8              # 48 (rows 0..K-1 weights, K bias)
assert C_USED <= SLAB_COLS

# ----- output slab layout -----------------------------------------------------
OUT_HID = NT * HIDDEN                           # hidden columns (TERM_ORDER)
OUT_AUX = OUT_HID                               # per-term aux columns
OUT_LOGITS = OUT_AUX + NT
OUT_PROB = OUT_LOGITS + 1
OUT_USED = OUT_PROB + 1                         # 38
OUT_W = 128                                     # lane-dense, one unmasked store


# ----- the single fused Pallas kernel ----------------------------------------
def fused_kernel(x_ref, wb_ref, out_ref):
    row_idx = jax.lax.broadcasted_iota(jnp.int32, (B_PAD, 1), 0)
    valid = (row_idx < BATCH).astype(jnp.float32)          # (B_PAD, 1)
    inv_b = 1.0 / float(BATCH)

    def w_blk(c0, width):                                  # weight rows
        return wb_ref[0:K, c0:c0 + width]

    def b_blk(c0, width):                                  # bias row
        return wb_ref[K:K + 1, c0:c0 + width]

    x = x_ref[...]                                         # (B_PAD, K)

    # ---- CompleteGeneModule: per-gene linear (block-diag matmul) -> tanh
    #      -> BatchNorm1d(1) over batch*genes (training statistics) ----------
    y = jnp.dot(x, w_blk(COL_GENE, NUM_GENES),
                preferred_element_type=jnp.float32) + b_blk(COL_GENE, NUM_GENES)
    y = jnp.tanh(y)                                        # (B_PAD, G)
    n_valid = float(BATCH * NUM_GENES)
    mean = jnp.sum(y * valid) / n_valid
    var = jnp.sum(((y - mean) ** 2) * valid) / n_valid
    gene_out = (y - mean) * jax.lax.rsqrt(var + BN_EPS)    # (B_PAD, G)

    # ---- TermModules: one MXU matmul + one BatchNorm per ontology layer,
    #      all terms of the layer packed along lanes --------------------------
    hns, aux_cols = [], []
    done = 0                                               # hidden cols filled
    for l, layer in enumerate(TERM_LAYERS):
        L = len(layer)
        pieces = [gene_out] + hns
        if done < NT * HIDDEN:
            pieces.append(jnp.zeros((B_PAD, NT * HIDDEN - done), jnp.float32))
        state = jnp.concatenate(pieces, axis=1)            # (B_PAD, K)

        h = jnp.tanh(jnp.dot(state, w_blk(COL_W1[l], L * HIDDEN),
                             preferred_element_type=jnp.float32)
                     + b_blk(COL_W1[l], L * HIDDEN))       # (B_PAD, L*H)
        m = jnp.sum(h * valid, axis=0, keepdims=True) * inv_b
        v = jnp.sum(((h - m) ** 2) * valid, axis=0, keepdims=True) * inv_b
        hn = (h - m) * jax.lax.rsqrt(v + BN_EPS)           # (B_PAD, L*H)

        r0 = NUM_GENES + done                              # sublane-aligned
        w2 = wb_ref[r0:r0 + L * HIDDEN, COL_W2[l]:COL_W2[l] + L]   # (L*H, L)
        aux = jnp.tanh(jnp.dot(hn, w2, preferred_element_type=jnp.float32)
                       + b_blk(COL_W2[l], L))              # (B_PAD, L)

        hns.append(hn)
        aux_cols.append(aux)
        done += L * HIDDEN

    hid_all = jnp.concatenate(hns, axis=1)                 # (B_PAD, NT*H)

    # ---- final aux linear + sigmoid -----------------------------------------
    wf = wb_ref[NUM_GENES:NUM_GENES + NT * HIDDEN, COL_FINAL:COL_FINAL + 1]
    logits = (jnp.dot(hid_all, wf, preferred_element_type=jnp.float32)
              + b_blk(COL_FINAL, 1))                       # (B_PAD, 1)
    prob = jax.nn.sigmoid(logits)

    pad = jnp.zeros((B_PAD, OUT_W - OUT_USED), jnp.float32)
    out_ref[...] = jnp.concatenate([hid_all] + aux_cols + [logits, prob, pad],
                                   axis=1)                 # one unmasked store


# ----- host-side packing of ALL weights into one slab (call once per params) -
def pack_weights(params):
    wb = np.zeros((SLAB_ROWS, SLAB_COLS), np.float32)
    BIAS = K

    gw = np.asarray(params["gene_w"], np.float32)          # (G, F)
    gb = np.asarray(params["gene_b"], np.float32)          # (1, G)
    for g in range(NUM_GENES):                             # block-diag gene linear
        wb[g * FEATURE_DIM:(g + 1) * FEATURE_DIM, COL_GENE + g] = gw[g]
    wb[BIAS, COL_GENE:COL_GENE + NUM_GENES] = gb[0]

    for l, layer in enumerate(TERM_LAYERS):
        for p, term in enumerate(layer):
            prm = params[term]
            w1 = np.asarray(prm["w1"], np.float32)         # (Din, H)
            c1 = COL_W1[l] + p * HIDDEN
            off = 0
            for child in TERM_CHILDREN[term]:              # child hidden rows
                ci = TERM_INDEX[child]
                wb[NUM_GENES + ci * HIDDEN:NUM_GENES + (ci + 1) * HIDDEN,
                   c1:c1 + HIDDEN] = w1[off:off + HIDDEN]
                off += HIDDEN
            for j, gid in enumerate(TERM_DIRECT_GENE_MAP.get(term, ())):
                wb[gid, c1:c1 + HIDDEN] = w1[off + j]      # scattered gene rows
            wb[BIAS, c1:c1 + HIDDEN] = np.asarray(prm["b1"], np.float32)[0]

            ti = TERM_INDEX[term]
            c2 = COL_W2[l] + p
            wb[NUM_GENES + ti * HIDDEN:NUM_GENES + (ti + 1) * HIDDEN, c2] = \
                np.asarray(prm["w2"], np.float32)[0]
            wb[BIAS, c2] = float(np.asarray(prm["b2"])[0, 0])

    ri = TERM_INDEX[ROOT]
    wb[NUM_GENES + ri * HIDDEN:NUM_GENES + (ri + 1) * HIDDEN, COL_FINAL] = \
        np.asarray(params["final_w"], np.float32)[0]
    wb[BIAS, COL_FINAL] = float(np.asarray(params["final_b"])[0, 0])
    return jnp.asarray(wb)


@jax.jit
def genovnn_forward(wb_slab, x):
    B, G, F = x.shape
    if (B, G, F) != (BATCH, NUM_GENES, FEATURE_DIM):
        raise ValueError("input shape does not match compiled ontology constants")
    x_flat = x.reshape(B, G * F).astype(jnp.float32)        # column = g*F + f
    x_slab = jnp.pad(x_flat, ((0, B_PAD - B), (0, K - G * F)))

    out = pl.pallas_call(
        fused_kernel,
        out_shape=jax.ShapeDtypeStruct((B_PAD, OUT_W), jnp.float32),
        in_specs=[pl.BlockSpec(memory_space=pltpu.MemorySpace.VMEM)] * 2,
        out_specs=pl.BlockSpec(memory_space=pltpu.MemorySpace.VMEM),
        compiler_params=pltpu.CompilerParams(vmem_limit_bytes=32 * 1024 * 1024),
    )(x_slab, wb_slab)

    aux_out_map, hidden_embeddings_map = {}, {}
    for i, term in enumerate(TERM_ORDER):
        hidden_embeddings_map[term] = out[:B, i * HIDDEN:(i + 1) * HIDDEN]
        aux_out_map[term] = out[:B, OUT_AUX + i:OUT_AUX + i + 1]
    aux_out_map["final_logits"] = out[:B, OUT_LOGITS:OUT_LOGITS + 1]
    aux_out_map["final"] = out[:B, OUT_PROB:OUT_PROB + 1]
    return aux_out_map, hidden_embeddings_map


# ----- parameter init (deterministic, synthetic) -----------------------------
def term_input_size(term):
    size = HIDDEN * len(TERM_CHILDREN[term])
    size += len(TERM_DIRECT_GENE_MAP.get(term, ()))
    return size


def init_params(key):
    params = {}
    key, k1, k2 = jax.random.split(key, 3)
    params["gene_w"] = jax.random.normal(k1, (NUM_GENES, FEATURE_DIM), jnp.float32)
    params["gene_b"] = jax.random.normal(k2, (1, NUM_GENES), jnp.float32)
    for term in TERM_ORDER:
        din = term_input_size(term)
        key, ka, kb, kc, kd = jax.random.split(key, 5)
        params[term] = {
            "w1": jax.random.normal(ka, (din, HIDDEN), jnp.float32) / jnp.sqrt(float(din)),
            "b1": jax.random.normal(kb, (1, HIDDEN), jnp.float32) * 0.1,
            "w2": jax.random.normal(kc, (1, HIDDEN), jnp.float32) / jnp.sqrt(float(HIDDEN)),
            "b2": jax.random.normal(kd, (1, 1), jnp.float32) * 0.1,
        }
    key, kf1, kf2 = jax.random.split(key, 3)
    params["final_w"] = jax.random.normal(kf1, (1, HIDDEN), jnp.float32) / jnp.sqrt(float(HIDDEN))
    params["final_b"] = jax.random.normal(kf2, (1, 1), jnp.float32) * 0.1
    return params


# ----- pure-JAX reference for a correctness self-check ------------------------
def genovnn_reference(params, x):
    y = jnp.einsum("bgf,gf->bg", x, params["gene_w"]) + params["gene_b"]
    y = jnp.tanh(y)
    mean = jnp.mean(y)
    var = jnp.mean((y - mean) ** 2)
    gene_out = (y - mean) / jnp.sqrt(var + BN_EPS)
    hidden, aux = {}, {}
    for layer in TERM_LAYERS:
        for term in layer:
            pieces = [hidden[c] for c in TERM_CHILDREN[term]]
            if term in TERM_DIRECT_GENE_MAP:
                pieces.append(gene_out[:, jnp.asarray(TERM_DIRECT_GENE_MAP[term])])
            ci = jnp.concatenate(pieces, axis=1)
            p = params[term]
            h = jnp.tanh(ci @ p["w1"] + p["b1"])
            m = jnp.mean(h, axis=0, keepdims=True)
            v = jnp.mean((h - m) ** 2, axis=0, keepdims=True)
            hn = (h - m) / jnp.sqrt(v + BN_EPS)
            hidden[term] = hn
            aux[term] = jnp.tanh(hn @ p["w2"].T + p["b2"])
    logits = hidden[ROOT] @ params["final_w"].T + params["final_b"]
    aux["final_logits"] = logits
    aux["final"] = jax.nn.sigmoid(logits)
    return aux, hidden


if __name__ == "__main__":
    key = jax.random.PRNGKey(0)
    pkey, xkey = jax.random.split(key)
    params = init_params(pkey)
    x = jax.random.normal(xkey, (BATCH, NUM_GENES, FEATURE_DIM), dtype=jnp.float32)

    wb_slab = pack_weights(params)          # hoisted out of the per-call path
    aux_out_map, hidden_embeddings_map = genovnn_forward(wb_slab, x)
    jax.block_until_ready((aux_out_map, hidden_embeddings_map))

    assert aux_out_map["final"].shape == (BATCH, 1)
    assert aux_out_map["final_logits"].shape == (BATCH, 1)
    for term in TERM_ORDER:
        assert aux_out_map[term].shape == (BATCH, 1)
        assert hidden_embeddings_map[term].shape == (BATCH, HIDDEN)

    # numeric self-check against a pure-JAX reference
    ref_aux, ref_hid = genovnn_reference(params, x)
    for k, v in ref_aux.items():
        np.testing.assert_allclose(np.asarray(aux_out_map[k]), np.asarray(v),
                                   rtol=1e-4, atol=1e-4)
    for k, v in ref_hid.items():
        np.testing.assert_allclose(np.asarray(hidden_embeddings_map[k]),
                                   np.asarray(v), rtol=1e-4, atol=1e-4)

    print("KERNEL_OK")
</pallas_src>

<mosaic_0001>
module attributes {stable_mosaic.version = 11 : i64} {
  func.func @fused_kernel(%arg0: memref<8x40xf32, #tpu.memory_space<vmem>>, %arg1: memref<48x128xf32, #tpu.memory_space<vmem>>, %arg2: memref<8x128xf32, #tpu.memory_space<vmem>>) attributes {dimension_semantics = [], scalar_prefetch = 0 : i64, scratch_operands = 0 : i64, tpu.core_type = #tpu.core_type<tc>} {
    %0 = tpu.iota {dimensions = array<i32: 0>} : vector<8x1xi32>
    %c4_i32 = arith.constant 4 : i32
    %1 = vector.broadcast %c4_i32 : i32 to vector<8x1xi32>
    %2 = arith.cmpi slt, %0, %1 : vector<8x1xi32>
    %3 = arith.extui %2 : vector<8x1xi1> to vector<8x1xi32>
    %4 = arith.sitofp %3 : vector<8x1xi32> to vector<8x1xf32>
    %c0 = arith.constant 0 : index
    %c0_0 = arith.constant 0 : index
    %5 = vector.load %arg0[%c0, %c0_0] : memref<8x40xf32, #tpu.memory_space<vmem>>, vector<8x40xf32>
    %c0_1 = arith.constant 0 : index
    %c0_2 = arith.constant 0 : index
    %6 = vector.load %arg1[%c0_1, %c0_2] : memref<48x128xf32, #tpu.memory_space<vmem>>, vector<40x8xf32>
    %cst = arith.constant dense<0.000000e+00> : vector<8x8xf32>
    %7 = tpu.matmul %5, %6, %cst {dimension_numbers = #tpu.dot_dimension_numbers<[1], [0], [0], [1], [0, 0, 1, 1], [], []>} : vector<8x40xf32>, vector<40x8xf32>, vector<8x8xf32> -> vector<8x8xf32>
    %c40 = arith.constant 40 : index
    %c0_3 = arith.constant 0 : index
    %8 = vector.load %arg1[%c40, %c0_3] : memref<48x128xf32, #tpu.memory_space<vmem>>, vector<1x8xf32>
    %9 = vector.broadcast %8 : vector<1x8xf32> to vector<8x8xf32>
    %10 = arith.addf %7, %9 : vector<8x8xf32>
    %11 = math.tanh %10 : vector<8x8xf32>
    %12 = vector.broadcast %4 : vector<8x1xf32> to vector<8x8xf32>
    %13 = arith.mulf %11, %12 : vector<8x8xf32>
    %14 = vector.shape_cast %13 : vector<8x8xf32> to vector<1x8x8xf32>
    %cst_4 = arith.constant dense<0.000000e+00> : vector<1xf32>
    %15 = vector.multi_reduction <add>, %14, %cst_4 [1, 2] : vector<1x8x8xf32> to vector<1xf32>
    %16 = vector.shape_cast %15 : vector<1xf32> to vector<1x1x1xf32>
    %17 = vector.extract %16[0, 0, 0] : f32 from vector<1x1x1xf32>
    %cst_5 = arith.constant 3.200000e+01 : f32
    %18 = arith.divf %17, %cst_5 : f32
    %19 = vector.broadcast %18 : f32 to vector<8x8xf32>
    %20 = arith.subf %11, %19 : vector<8x8xf32>
    %21 = arith.mulf %20, %20 : vector<8x8xf32>
    %22 = vector.broadcast %4 : vector<8x1xf32> to vector<8x8xf32>
    %23 = arith.mulf %21, %22 : vector<8x8xf32>
    %24 = vector.shape_cast %23 : vector<8x8xf32> to vector<1x8x8xf32>
    %cst_6 = arith.constant dense<0.000000e+00> : vector<1xf32>
    %25 = vector.multi_reduction <add>, %24, %cst_6 [1, 2] : vector<1x8x8xf32> to vector<1xf32>
    %26 = vector.shape_cast %25 : vector<1xf32> to vector<1x1x1xf32>
    %27 = vector.extract %26[0, 0, 0] : f32 from vector<1x1x1xf32>
    %cst_7 = arith.constant 3.200000e+01 : f32
    %28 = arith.divf %27, %cst_7 : f32
    %29 = vector.broadcast %18 : f32 to vector<8x8xf32>
    %30 = arith.subf %11, %29 : vector<8x8xf32>
    %cst_8 = arith.constant 9.99999974E-6 : f32
    %31 = arith.addf %28, %cst_8 : f32
    %32 = math.rsqrt %31 : f32
    %33 = vector.broadcast %32 : f32 to vector<8x8xf32>
    %34 = arith.mulf %30, %33 : vector<8x8xf32>
    %cst_9 = arith.constant 0.000000e+00 : f32
    %35 = vector.broadcast %cst_9 : f32 to vector<8x32xf32>
    %36 = tpu.concatenate %34, %35 in 1 : vector<8x8xf32>, vector<8x32xf32> -> vector<8x40xf32>
    %c0_10 = arith.constant 0 : index
    %c8 = arith.constant 8 : index
    %37 = vector.load %arg1[%c0_10, %c8] : memref<48x128xf32, #tpu.memory_space<vmem>>, vector<40x16xf32>
    %cst_11 = arith.constant dense<0.000000e+00> : vector<8x16xf32>
    %38 = tpu.matmul %36, %37, %cst_11 {dimension_numbers = #tpu.dot_dimension_numbers<[1], [0], [0], [1], [0, 0, 1, 1], [], []>} : vector<8x40xf32>, vector<40x16xf32>, vector<8x16xf32> -> vector<8x16xf32>
    %c40_12 = arith.constant 40 : index
    %c8_13 = arith.constant 8 : index
    %39 = vector.load %arg1[%c40_12, %c8_13] : memref<48x128xf32, #tpu.memory_space<vmem>>, vector<1x16xf32>
    %40 = vector.broadcast %39 : vector<1x16xf32> to vector<8x16xf32>
    %41 = arith.addf %38, %40 : vector<8x16xf32>
    %42 = math.tanh %41 : vector<8x16xf32>
    %43 = vector.broadcast %4 : vector<8x1xf32> to vector<8x16xf32>
    %44 = arith.mulf %42, %43 : vector<8x16xf32>
    %cst_14 = arith.constant dense<0.000000e+00> : vector<16xf32>
    %45 = vector.multi_reduction <add>, %44, %cst_14 [0] : vector<8x16xf32> to vector<16xf32>
    %46 = vector.shape_cast %45 : vector<16xf32> to vector<1x16xf32>
    %cst_15 = arith.constant 2.500000e-01 : f32
    %47 = vector.broadcast %cst_15 : f32 to vector<1x16xf32>
    %48 = arith.mulf %46, %47 : vector<1x16xf32>
    %49 = vector.broadcast %48 : vector<1x16xf32> to vector<8x16xf32>
    %50 = arith.subf %42, %49 : vector<8x16xf32>
    %51 = arith.mulf %50, %50 : vector<8x16xf32>
    %52 = vector.broadcast %4 : vector<8x1xf32> to vector<8x16xf32>
    %53 = arith.mulf %51, %52 : vector<8x16xf32>
    %cst_16 = arith.constant dense<0.000000e+00> : vector<16xf32>
    %54 = vector.multi_reduction <add>, %53, %cst_16 [0] : vector<8x16xf32> to vector<16xf32>
    %55 = vector.shape_cast %54 : vector<16xf32> to vector<1x16xf32>
    %cst_17 = arith.constant 2.500000e-01 : f32
    %56 = vector.broadcast %cst_17 : f32 to vector<1x16xf32>
    %57 = arith.mulf %55, %56 : vector<1x16xf32>
    %58 = vector.broadcast %48 : vector<1x16xf32> to vector<8x16xf32>
    %59 = arith.subf %42, %58 : vector<8x16xf32>
    %cst_18 = arith.constant 9.99999974E-6 : f32
    %60 = vector.broadcast %cst_18 : f32 to vector<1x16xf32>
    %61 = arith.addf %57, %60 : vector<1x16xf32>
    %62 = math.rsqrt %61 : vector<1x16xf32>
    %63 = vector.broadcast %62 : vector<1x16xf32> to vector<8x16xf32>
    %64 = arith.mulf %59, %63 : vector<8x16xf32>
    %c8_19 = arith.constant 8 : index
    %c24 = arith.constant 24 : index
    %65 = vector.load %arg1[%c8_19, %c24] : memref<48x128xf32, #tpu.memory_space<vmem>>, vector<16x2xf32>
    %cst_20 = arith.constant dense<0.000000e+00> : vector<8x2xf32>
    %66 = tpu.matmul %64, %65, %cst_20 {dimension_numbers = #tpu.dot_dimension_numbers<[1], [0], [0], [1], [0, 0, 1, 1], [], []>} : vector<8x16xf32>, vector<16x2xf32>, vector<8x2xf32> -> vector<8x2xf32>
    %c40_21 = arith.constant 40 : index
    %c24_22 = arith.constant 24 : index
    %67 = vector.load %arg1[%c40_21, %c24_22] : memref<48x128xf32, #tpu.memory_space<vmem>>, vector<1x2xf32>
    %68 = vector.broadcast %67 : vector<1x2xf32> to vector<8x2xf32>
    %69 = arith.addf %66, %68 : vector<8x2xf32>
    %70 = math.tanh %69 : vector<8x2xf32>
    %cst_23 = arith.constant 0.000000e+00 : f32
    %71 = vector.broadcast %cst_23 : f32 to vector<8x16xf32>
    %72 = tpu.concatenate %34, %64, %71 in 1 : vector<8x8xf32>, vector<8x16xf32>, vector<8x16xf32> -> vector<8x40xf32>
    %c0_24 = arith.constant 0 : index
    %c26 = arith.constant 26 : index
    %73 = vector.load %arg1[%c0_24, %c26] : memref<48x128xf32, #tpu.memory_space<vmem>>, vector<40x8xf32>
    %cst_25 = arith.constant dense<0.000000e+00> : vector<8x8xf32>
    %74 = tpu.matmul %72, %73, %cst_25 {dimension_numbers = #tpu.dot_dimension_numbers<[1], [0], [0], [1], [0, 0, 1, 1], [], []>} : vector<8x40xf32>, vector<40x8xf32>, vector<8x8xf32> -> vector<8x8xf32>
    %c40_26 = arith.constant 40 : index
    %c26_27 = arith.constant 26 : index
    %75 = vector.load %arg1[%c40_26, %c26_27] : memref<48x128xf32, #tpu.memory_space<vmem>>, vector<1x8xf32>
    %76 = vector.broadcast %75 : vector<1x8xf32> to vector<8x8xf32>
    %77 = arith.addf %74, %76 : vector<8x8xf32>
    %78 = math.tanh %77 : vector<8x8xf32>
    %79 = vector.broadcast %4 : vector<8x1xf32> to vector<8x8xf32>
    %80 = arith.mulf %78, %79 : vector<8x8xf32>
    %cst_28 = arith.constant dense<0.000000e+00> : vector<8xf32>
    %81 = vector.multi_reduction <add>, %80, %cst_28 [0] : vector<8x8xf32> to vector<8xf32>
    %82 = vector.shape_cast %81 : vector<8xf32> to vector<1x8xf32>
    %cst_29 = arith.constant 2.500000e-01 : f32
    %83 = vector.broadcast %cst_29 : f32 to vector<1x8xf32>
    %84 = arith.mulf %82, %83 : vector<1x8xf32>
    %85 = vector.broadcast %84 : vector<1x8xf32> to vector<8x8xf32>
    %86 = arith.subf %78, %85 : vector<8x8xf32>
    %87 = arith.mulf %86, %86 : vector<8x8xf32>
    %88 = vector.broadcast %4 : vector<8x1xf32> to vector<8x8xf32>
    %89 = arith.mulf %87, %88 : vector<8x8xf32>
    %cst_30 = arith.constant dense<0.000000e+00> : vector<8xf32>
    %90 = vector.multi_reduction <add>, %89, %cst_30 [0] : vector<8x8xf32> to vector<8xf32>
    %91 = vector.shape_cast %90 : vector<8xf32> to vector<1x8xf32>
    %cst_31 = arith.constant 2.500000e-01 : f32
    %92 = vector.broadcast %cst_31 : f32 to vector<1x8xf32>
    %93 = arith.mulf %91, %92 : vector<1x8xf32>
    %94 = vector.broadcast %84 : vector<1x8xf32> to vector<8x8xf32>
    %95 = arith.subf %78, %94 : vector<8x8xf32>
    %cst_32 = arith.constant 9.99999974E-6 : f32
    %96 = vector.broadcast %cst_32 : f32 to vector<1x8xf32>
    %97 = arith.addf %93, %96 : vector<1x8xf32>
    %98 = math.rsqrt %97 : vector<1x8xf32>
    %99 = vector.broadcast %98 : vector<1x8xf32> to vector<8x8xf32>
    %100 = arith.mulf %95, %99 : vector<8x8xf32>
    %c24_33 = arith.constant 24 : index
    %c34 = arith.constant 34 : index
    %101 = vector.load %arg1[%c24_33, %c34] : memref<48x128xf32, #tpu.memory_space<vmem>>, vector<8x1xf32>
    %cst_34 = arith.constant dense<0.000000e+00> : vector<8x1xf32>
    %102 = tpu.matmul %100, %101, %cst_34 {dimension_numbers = #tpu.dot_dimension_numbers<[1], [0], [0], [1], [0, 0, 1, 1], [], []>} : vector<8x8xf32>, vector<8x1xf32>, vector<8x1xf32> -> vector<8x1xf32>
    %c40_35 = arith.constant 40 : index
    %c34_36 = arith.constant 34 : index
    %103 = vector.load %arg1[%c40_35, %c34_36] : memref<48x128xf32, #tpu.memory_space<vmem>>, vector<1x1xf32>
    %104 = vector.broadcast %103 : vector<1x1xf32> to vector<8x1xf32>
    %105 = arith.addf %102, %104 : vector<8x1xf32>
    %106 = math.tanh %105 : vector<8x1xf32>
    %cst_37 = arith.constant 0.000000e+00 : f32
    %107 = vector.broadcast %cst_37 : f32 to vector<8x8xf32>
    %108 = tpu.concatenate %34, %64, %100, %107 in 1 : vector<8x8xf32>, vector<8x16xf32>, vector<8x8xf32>, vector<8x8xf32> -> vector<8x40xf32>
    %c0_38 = arith.constant 0 : index
    %c35 = arith.constant 35 : index
    %109 = vector.load %arg1[%c0_38, %c35] : memref<48x128xf32, #tpu.memory_space<vmem>>, vector<40x8xf32>
    %cst_39 = arith.constant dense<0.000000e+00> : vector<8x8xf32>
    %110 = tpu.matmul %108, %109, %cst_39 {dimension_numbers = #tpu.dot_dimension_numbers<[1], [0], [0], [1], [0, 0, 1, 1], [], []>} : vector<8x40xf32>, vector<40x8xf32>, vector<8x8xf32> -> vector<8x8xf32>
    %c40_40 = arith.constant 40 : index
    %c35_41 = arith.constant 35 : index
    %111 = vector.load %arg1[%c40_40, %c35_41] : memref<48x128xf32, #tpu.memory_space<vmem>>, vector<1x8xf32>
    %112 = vector.broadcast %111 : vector<1x8xf32> to vector<8x8xf32>
    %113 = arith.addf %110, %112 : vector<8x8xf32>
    %114 = math.tanh %113 : vector<8x8xf32>
    %115 = vector.broadcast %4 : vector<8x1xf32> to vector<8x8xf32>
    %116 = arith.mulf %114, %115 : vector<8x8xf32>
    %cst_42 = arith.constant dense<0.000000e+00> : vector<8xf32>
    %117 = vector.multi_reduction <add>, %116, %cst_42 [0] : vector<8x8xf32> to vector<8xf32>
    %118 = vector.shape_cast %117 : vector<8xf32> to vector<1x8xf32>
    %cst_43 = arith.constant 2.500000e-01 : f32
    %119 = vector.broadcast %cst_43 : f32 to vector<1x8xf32>
    %120 = arith.mulf %118, %119 : vector<1x8xf32>
    %121 = vector.broadcast %120 : vector<1x8xf32> to vector<8x8xf32>
    %122 = arith.subf %114, %121 : vector<8x8xf32>
    %123 = arith.mulf %122, %122 : vector<8x8xf32>
    %124 = vector.broadcast %4 : vector<8x1xf32> to vector<8x8xf32>
    %125 = arith.mulf %123, %124 : vector<8x8xf32>
    %cst_44 = arith.constant dense<0.000000e+00> : vector<8xf32>
    %126 = vector.multi_reduction <add>, %125, %cst_44 [0] : vector<8x8xf32> to vector<8xf32>
    %127 = vector.shape_cast %126 : vector<8xf32> to vector<1x8xf32>
    %cst_45 = arith.constant 2.500000e-01 : f32
    %128 = vector.broadcast %cst_45 : f32 to vector<1x8xf32>
    %129 = arith.mulf %127, %128 : vector<1x8xf32>
    %130 = vector.broadcast %120 : vector<1x8xf32> to vector<8x8xf32>
    %131 = arith.subf %114, %130 : vector<8x8xf32>
    %cst_46 = arith.constant 9.99999974E-6 : f32
    %132 = vector.broadcast %cst_46 : f32 to vector<1x8xf32>
    %133 = arith.addf %129, %132 : vector<1x8xf32>
    %134 = math.rsqrt %133 : vector<1x8xf32>
    %135 = vector.broadcast %134 : vector<1x8xf32> to vector<8x8xf32>
    %136 = arith.mulf %131, %135 : vector<8x8xf32>
    %c32 = arith.constant 32 : index
    %c43 = arith.constant 43 : index
    %137 = vector.load %arg1[%c32, %c43] : memref<48x128xf32, #tpu.memory_space<vmem>>, vector<8x1xf32>
    %cst_47 = arith.constant dense<0.000000e+00> : vector<8x1xf32>
    %138 = tpu.matmul %136, %137, %cst_47 {dimension_numbers = #tpu.dot_dimension_numbers<[1], [0], [0], [1], [0, 0, 1, 1], [], []>} : vector<8x8xf32>, vector<8x1xf32>, vector<8x1xf32> -> vector<8x1xf32>
    %c40_48 = arith.constant 40 : index
    %c43_49 = arith.constant 43 : index
    %139 = vector.load %arg1[%c40_48, %c43_49] : memref<48x128xf32, #tpu.memory_space<vmem>>, vector<1x1xf32>
    %140 = vector.broadcast %139 : vector<1x1xf32> to vector<8x1xf32>
    %141 = arith.addf %138, %140 : vector<8x1xf32>
    %142 = math.tanh %141 : vector<8x1xf32>
    %143 = tpu.concatenate %64, %100, %136 in 1 : vector<8x16xf32>, vector<8x8xf32>, vector<8x8xf32> -> vector<8x32xf32>
    %c8_50 = arith.constant 8 : index
    %c44 = arith.constant 44 : index
    %144 = vector.load %arg1[%c8_50, %c44] : memref<48x128xf32, #tpu.memory_space<vmem>>, vector<32x1xf32>
    %cst_51 = arith.constant dense<0.000000e+00> : vector<8x1xf32>
    %145 = tpu.matmul %143, %144, %cst_51 {dimension_numbers = #tpu.dot_dimension_numbers<[1], [0], [0], [1], [0, 0, 1, 1], [], []>} : vector<8x32xf32>, vector<32x1xf32>, vector<8x1xf32> -> vector<8x1xf32>
    %c40_52 = arith.constant 40 : index
    %c44_53 = arith.constant 44 : index
    %146 = vector.load %arg1[%c40_52, %c44_53] : memref<48x128xf32, #tpu.memory_space<vmem>>, vector<1x1xf32>
    %147 = vector.broadcast %146 : vector<1x1xf32> to vector<8x1xf32>
    %148 = arith.addf %145, %147 : vector<8x1xf32>
    %149 = arith.negf %148 : vector<8x1xf32>
    %150 = math.exp %149 : vector<8x1xf32>
    %cst_54 = arith.constant 1.000000e+00 : f32
    %151 = vector.broadcast %cst_54 : f32 to vector<8x1xf32>
    %152 = arith.addf %151, %150 : vector<8x1xf32>
    %153 = arith.divf %151, %152 : vector<8x1xf32>
    %cst_55 = arith.constant 0.000000e+00 : f32
    %154 = vector.broadcast %cst_55 : f32 to vector<8x90xf32>
    %155 = tpu.concatenate %143, %70, %106, %142, %148, %153, %154 in 1 : vector<8x32xf32>, vector<8x2xf32>, vector<8x1xf32>, vector<8x1xf32>, vector<8x1xf32>, vector<8x1xf32>, vector<8x90xf32> -> vector<8x128xf32>
    %c0_56 = arith.constant 0 : index
    %c0_57 = arith.constant 0 : index
    %156 = vector.load %arg2[%c0_56, %c0_57] : memref<8x128xf32, #tpu.memory_space<vmem>>, vector<8x128xf32>
    tpu.vector_store %arg2[%c0_56, %c0_57], %155 {strides = array<i32>} : memref<8x128xf32, #tpu.memory_space<vmem>>, vector<8x128xf32>,
    return
  }
}

</mosaic_0001>

<llo_original>
// kernel: genovnn_forward.1
$region0: #{genovnn_forward.1}
  #allocation0 [shape = 'u32[]', space=smem, size = 0x4, offset = 0x4, fixed_abs, tag = 'smem constant byte address 0x4 - core index']
  #allocation1 [shape = 'u32[144,128]{1,0:T(1,128)}', space=vmem, size = 0x12000, scoped, tag = 'internal scratch']
  %s0 = inlined_call_operand.vmem [shape: f32[8,40], index: 0, kind: input, shape index: {}]
  %s1 = inlined_call_operand.vmem [shape: f32[48,128], index: 1, kind: input, shape index: {}]
  %s2 = inlined_call_operand.vmem [shape: f32[8,128], index: 2, kind: output, shape index: {}]
  %s3 = sld [smem:[#allocation0]]
  $region18: #{genovnn_forward.1} parent=0
    _
  %s5 = ssub.s32 1, %s3
  %s6 = scalar_select 0, %s5, %s3
  // Predicated region
  $region2: #{genovnn_forward.1} parent=0 // pred_check
    _
  $region3: #{genovnn_forward.1} parent=0 // pred_check_branch
    %8 = sbr.rel (0) target = $region5
  $region4: #{genovnn_forward.1} parent=0 // pred_region
    _
  $region5: #{genovnn_forward.1} parent=0 // pred_fallthru
    _
  // Predicated region
  $region6: #{genovnn_forward.1} parent=0 // pred_check
    _
  $region7: #{genovnn_forward.1} parent=0 // pred_check_branch
    %10 = sbr.rel (0) target = $region9
  $region8: #{genovnn_forward.1} parent=0 // pred_region
    _
  $region9: #{genovnn_forward.1} parent=0 // pred_fallthru
    _
  %v11 = vlaneseq
  %v12 = vshrl.u32 %v11, 7
  %vm13 = vcmp.lt.s32.totalorder %v12, 4
  %v14 = vsel %vm13, 1, 0
  %v15 = vcvt.s32.f32 %v14
  %v16 = vld [vmem:[%s0] sm:$0xff]
  %v17 = vld [vmem:[%s1] sm:$0xff]
  %v18 = vld [vmem:[%s1 + $0x8] sm:$0xff]
  %v19 = vld [vmem:[%s1 + $0x10] sm:$0xff]
  %v20 = vld [vmem:[%s1 + $0x18] sm:$0xff]
  %v21 = vld [vmem:[%s1 + $0x20] sm:$0xff]
  %v22 = vld [vmem:[%s1 + $0x28] sm:$0x1]
  %v23 = vlaneseq
  %v24 = vshrl.u32 %v23, 7
  %v25 = vsub.s32 0, %v24
  %v26 = vrot.slane %v22, %v25
  %vm27 = vcmask 326656
  %v29 = vsel %vm27, %v16, 0
  %31 = vmatprep.subr.mxu0 0.0
  %32 = vmatpush1.msra.mxu0 0.0
  %33 = vmatprep.subr.mxu0 0.0
  %34 = vmatpush1.msra.mxu0 0.0
  %35 = vmatprep.subr.mxu0 0.0
  %36 = vmatpush1.msra.mxu0 0.0
  %37 = vmatprep.subr.mxu0 0.0
  %38 = vmatpush1.msra.mxu0 0.0
  %39 = vmatprep.subr.mxu0 0.0
  %40 = vmatpush1.msra.mxu0 0.0
  %41 = vmatprep.subr.mxu0 0.0
  %42 = vmatpush1.msra.mxu0 0.0
  %43 = vmatprep.subr.mxu0 0.0
  %44 = vmatpush1.msra.mxu0 0.0
  %45 = vmatprep.subr.mxu0 0.0
  %46 = vmatpush1.msra.mxu0 0.0
  %47 = vmatprep.subr.mxu0 0.0
  %48 = vmatpush1.msra.mxu0 0.0
  %49 = vmatprep.subr.mxu0 0.0
  %50 = vmatpush1.msra.mxu0 0.0
  %51 = vmatprep.subr.mxu0 0.0
  %52 = vmatpush1.msra.mxu0 0.0
  %53 = vmatprep.subr.mxu0 0.0
  %54 = vmatpush1.msra.mxu0 %v21
  %55 = vmatprep.subr.mxu0 0.0
  %56 = vmatpush1.msra.mxu0 %v20
  %57 = vmatprep.subr.mxu0 0.0
  %58 = vmatpush1.msra.mxu0 %v19
  %59 = vmatprep.subr.mxu0 0.0
  %60 = vmatpush1.msra.mxu0 %v18
  %61 = vmatprep.subr.mxu0 0.0
  %62 = vmatpush1.msra.mxu0 %v17
  %63 = vmatprep.subr.mxu0 0.0
  %64 = vmatpush2.msra.mxu0 0.0
  %65 = vmatprep.subr.mxu0 0.0
  %66 = vmatpush2.msra.mxu0 0.0
  %67 = vmatprep.subr.mxu0 0.0
  %68 = vmatpush2.msra.mxu0 0.0
  %69 = vmatprep.subr.mxu0 0.0
  %70 = vmatpush2.msra.mxu0 0.0
  %71 = vmatprep.subr.mxu0 0.0
  %72 = vmatpush2.msra.mxu0 0.0
  %73 = vmatprep.subr.mxu0 0.0
  %74 = vmatpush2.msra.mxu0 0.0
  %75 = vmatprep.subr.mxu0 0.0
  %76 = vmatpush2.msra.mxu0 0.0
  %77 = vmatprep.subr.mxu0 0.0
  %78 = vmatpush2.msra.mxu0 0.0
  %79 = vmatprep.subr.mxu0 0.0
  %80 = vmatpush2.msra.mxu0 0.0
  %81 = vmatprep.subr.mxu0 0.0
  %82 = vmatpush2.msra.mxu0 0.0
  %83 = vmatprep.subr.mxu0 0.0
  %84 = vmatpush2.msra.mxu0 0.0
  %85 = vmatprep.subr.mxu0 0.0
  %86 = vmatpush2.msra.mxu0 0.0
  %87 = vmatprep.subr.mxu0 0.0
  %88 = vmatpush2.msra.mxu0 0.0
  %89 = vmatprep.subr.mxu0 0.0
  %90 = vmatpush2.msra.mxu0 0.0
  %91 = vmatprep.subr.mxu0 0.0
  %92 = vmatpush2.msra.mxu0 0.0
  %93 = vmatprep.subr.mxu0 0.0
  %94 = vmatpush2.msra.mxu0 0.0
  %95 = vmatprep.mubr.f32.mxu0 0.0
  %96 = vmatmul.mubr.f32.gmra.mxu0 %v29
  %v97 = vpop.f32.mrf.mxu0
  %v98 = vadd.f32 %v26, %v97
  %v99 = vpop.f32.mrf.mxu0
  %100 = vdwg.mxu0
  %v101 = vtanh.pop %v98
  %v102 = vmul.f32 %v101, %v15
  %vm103 = vcmask 64512
  %v104 = vsel %vm103, %v102, 0.0
  %105 = vadd.xlane.f32.xlu0 %v104
  %v106 = vpop.xlane.xlu0 %105
  %v107 = vrot.slane %v106, 4
  %v108 = vadd.f32 %v106, %v107
  %v109 = vrot.slane %v108, 2
  %v110 = vadd.f32 %v108, %v109
  %v111 = vrot.slane %v110, 1
  %v112 = vadd.f32 %v110, %v111
  %s113 = vtos %v112
  %v114 = vrcp.pop 32.0
  %s115 = vtos %v114
  %s116 = smul.f32 %s113, %s115
  %v117 = vstv %s116
  %v118 = vsub.f32 %v101, %v117
  %v119 = vmul.f32 %v118, %v118
  %v120 = vmul.f32 %v119, %v15
  %v121 = vsel %vm103, %v120, 0.0
  %122 = vadd.xlane.f32.xlu0 %v121
  %v123 = vpop.xlane.xlu0 %122
  %v124 = vrot.slane %v123, 4
  %v125 = vadd.f32 %v123, %v124
  %v126 = vrot.slane %v125, 2
  %v127 = vadd.f32 %v125, %v126
  %v128 = vrot.slane %v127, 1
  %v129 = vadd.f32 %v127, %v128
  %s130 = vtos %v129
  %v131 = vrcp.pop 32.0
  %s132 = vtos %v131
  %s133 = smul.f32 %s130, %s132
  %s134 = sadd.f32 %s133, 1e-05
  %v135 = vstv %s134
  %v136 = vrsqrt.pop %v135
  %s137 = vtos %v136
  %v138 = vstv %s137
  %v139 = vmul.f32 %v118, %v138
  %v140 = vsel %vm103, %v139, 0.0
  %146 = vrot.lane.b32.xlu0 %v17, 120
  %v147 = vpop.permute.xlu0 %146
  %148 = vrot.lane.b32.xlu0 %v18, 120
  %v149 = vpop.permute.xlu0 %148
  %150 = vrot.lane.b32.xlu0 %v19, 120
  %v151 = vpop.permute.xlu0 %150
  %152 = vrot.lane.b32.xlu0 %v20, 120
  %v153 = vpop.permute.xlu0 %152
  %154 = vrot.lane.b32.xlu0 %v21, 120
  %v155 = vpop.permute.xlu0 %154
  %162 = vrot.lane.b32.xlu0 %v26, 120
  %v163 = vpop.permute.xlu0 %162
  %v166 = vsel %vm27, %v140, 0
  %168 = vmatprep.subr.mxu0 0.0
  %169 = vmatpush1.msra.mxu0 0.0
  %170 = vmatprep.subr.mxu0 0.0
  %171 = vmatpush1.msra.mxu0 0.0
  %172 = vmatprep.subr.mxu0 0.0
  %173 = vmatpush1.msra.mxu0 0.0
  %174 = vmatprep.subr.mxu0 0.0
  %175 = vmatpush1.msra.mxu0 0.0
  %176 = vmatprep.subr.mxu0 0.0
  %177 = vmatpush1.msra.mxu0 0.0
  %178 = vmatprep.subr.mxu0 0.0
  %179 = vmatpush1.msra.mxu0 0.0
  %180 = vmatprep.subr.mxu0 0.0
  %181 = vmatpush1.msra.mxu0 0.0
  %182 = vmatprep.subr.mxu0 0.0
  %183 = vmatpush1.msra.mxu0 0.0
  %184 = vmatprep.subr.mxu0 0.0
  %185 = vmatpush1.msra.mxu0 0.0
  %186 = vmatprep.subr.mxu0 0.0
  %187 = vmatpush1.msra.mxu0 0.0
  %188 = vmatprep.subr.mxu0 0.0
  %189 = vmatpush1.msra.mxu0 0.0
  %190 = vmatprep.subr.mxu0 0.0
  %191 = vmatpush1.msra.mxu0 %v155
  %192 = vmatprep.subr.mxu0 0.0
  %193 = vmatpush1.msra.mxu0 %v153
  %194 = vmatprep.subr.mxu0 0.0
  %195 = vmatpush1.msra.mxu0 %v151
  %196 = vmatprep.subr.mxu0 0.0
  %197 = vmatpush1.msra.mxu0 %v149
  %198 = vmatprep.subr.mxu0 0.0
  %199 = vmatpush1.msra.mxu0 %v147
  %200 = vmatprep.subr.mxu0 0.0
  %201 = vmatpush2.msra.mxu0 0.0
  %202 = vmatprep.subr.mxu0 0.0
  %203 = vmatpush2.msra.mxu0 0.0
  %204 = vmatprep.subr.mxu0 0.0
  %205 = vmatpush2.msra.mxu0 0.0
  %206 = vmatprep.subr.mxu0 0.0
  %207 = vmatpush2.msra.mxu0 0.0
  %208 = vmatprep.subr.mxu0 0.0
  %209 = vmatpush2.msra.mxu0 0.0
  %210 = vmatprep.subr.mxu0 0.0
  %211 = vmatpush2.msra.mxu0 0.0
  %212 = vmatprep.subr.mxu0 0.0
  %213 = vmatpush2.msra.mxu0 0.0
  %214 = vmatprep.subr.mxu0 0.0
  %215 = vmatpush2.msra.mxu0 0.0
  %216 = vmatprep.subr.mxu0 0.0
  %217 = vmatpush2.msra.mxu0 0.0
  %218 = vmatprep.subr.mxu0 0.0
  %219 = vmatpush2.msra.mxu0 0.0
  %220 = vmatprep.subr.mxu0 0.0
  %221 = vmatpush2.msra.mxu0 0.0
  %222 = vmatprep.subr.mxu0 0.0
  %223 = vmatpush2.msra.mxu0 0.0
  %224 = vmatprep.subr.mxu0 0.0
  %225 = vmatpush2.msra.mxu0 0.0
  %226 = vmatprep.subr.mxu0 0.0
  %227 = vmatpush2.msra.mxu0 0.0
  %228 = vmatprep.subr.mxu0 0.0
  %229 = vmatpush2.msra.mxu0 0.0
  %230 = vmatprep.subr.mxu0 0.0
  %231 = vmatpush2.msra.mxu0 0.0
  %232 = vmatprep.mubr.f32.mxu0 0.0
  %233 = vmatmul.mubr.f32.gmra.mxu0 %v166
  %v234 = vpop.f32.mrf.mxu0
  %v235 = vadd.f32 %v163, %v234
  %v236 = vpop.f32.mrf.mxu0
  %237 = vdwg.mxu0
  %v238 = vtanh.pop %v235
  %v239 = vmul.f32 %v238, %v15
  %vm240 = vcmask 130048
  %v241 = vsel %vm240, %v239, 0.0
  %v242 = vrot.slane %v241, 4
  %v243 = vadd.f32 %v241, %v242
  %v244 = vrot.slane %v243, 2
  %v245 = vadd.f32 %v243, %v244
  %v246 = vrot.slane %v245, 1
  %v247 = vadd.f32 %v245, %v246
  %v248 = vmul.f32 %v247, 0.25
  %v249 = vsub.f32 %v238, %v248
  %v250 = vmul.f32 %v249, %v249
  %v251 = vmul.f32 %v250, %v15
  %v252 = vsel %vm240, %v251, 0.0
  %v253 = vrot.slane %v252, 4
  %v254 = vadd.f32 %v252, %v253
  %v255 = vrot.slane %v254, 2
  %v256 = vadd.f32 %v254, %v255
  %v257 = vrot.slane %v256, 1
  %v258 = vadd.f32 %v256, %v257
  %v259 = vmul.f32 %v258, 0.25
  %v260 = vadd.f32 %v259, 1e-05
  %v261 = vrsqrt.pop %v260
  %v262 = vmul.f32 %v249, %v261
  %v263 = vld [vmem:[%s1 + $0x8] sm:$0xff]
  %v264 = vld [vmem:[%s1 + $0x10] sm:$0xff]
  %267 = vrot.lane.b32.xlu0 %v263, 104
  %v268 = vpop.permute.xlu0 %267
  %269 = vrot.lane.b32.xlu0 %v264, 104
  %v270 = vpop.permute.xlu0 %269
  %273 = vrot.lane.b32.xlu0 %v26, 104
  %v274 = vpop.permute.xlu0 %273
  %v277 = vsel %vm240, %v262, 0
  %279 = vmatprep.subr.mxu0 0.0
  %280 = vmatpush1.msra.mxu0 0.0
  %281 = vmatprep.subr.mxu0 0.0
  %282 = vmatpush1.msra.mxu0 0.0
  %283 = vmatprep.subr.mxu0 0.0
  %284 = vmatpush1.msra.mxu0 0.0
  %285 = vmatprep.subr.mxu0 0.0
  %286 = vmatpush1.msra.mxu0 0.0
  %287 = vmatprep.subr.mxu0 0.0
  %288 = vmatpush1.msra.mxu0 0.0
  %289 = vmatprep.subr.mxu0 0.0
  %290 = vmatpush1.msra.mxu0 0.0
  %291 = vmatprep.subr.mxu0 0.0
  %292 = vmatpush1.msra.mxu0 0.0
  %293 = vmatprep.subr.mxu0 0.0
  %294 = vmatpush1.msra.mxu0 0.0
  %295 = vmatprep.subr.mxu0 0.0
  %296 = vmatpush1.msra.mxu0 0.0
  %297 = vmatprep.subr.mxu0 0.0
  %298 = vmatpush1.msra.mxu0 0.0
  %299 = vmatprep.subr.mxu0 0.0
  %300 = vmatpush1.msra.mxu0 0.0
  %301 = vmatprep.subr.mxu0 0.0
  %302 = vmatpush1.msra.mxu0 0.0
  %303 = vmatprep.subr.mxu0 0.0
  %304 = vmatpush1.msra.mxu0 0.0
  %305 = vmatprep.subr.mxu0 0.0
  %306 = vmatpush1.msra.mxu0 0.0
  %307 = vmatprep.subr.mxu0 0.0
  %308 = vmatpush1.msra.mxu0 %v270
  %309 = vmatprep.subr.mxu0 0.0
  %310 = vmatpush1.msra.mxu0 %v268
  %311 = vmatprep.subr.mxu0 0.0
  %312 = vmatpush2.msra.mxu0 0.0
  %313 = vmatprep.subr.mxu0 0.0
  %314 = vmatpush2.msra.mxu0 0.0
  %315 = vmatprep.subr.mxu0 0.0
  %316 = vmatpush2.msra.mxu0 0.0
  %317 = vmatprep.subr.mxu0 0.0
  %318 = vmatpush2.msra.mxu0 0.0
  %319 = vmatprep.subr.mxu0 0.0
  %320 = vmatpush2.msra.mxu0 0.0
  %321 = vmatprep.subr.mxu0 0.0
  %322 = vmatpush2.msra.mxu0 0.0
  %323 = vmatprep.subr.mxu0 0.0
  %324 = vmatpush2.msra.mxu0 0.0
  %325 = vmatprep.subr.mxu0 0.0
  %326 = vmatpush2.msra.mxu0 0.0
  %327 = vmatprep.subr.mxu0 0.0
  %328 = vmatpush2.msra.mxu0 0.0
  %329 = vmatprep.subr.mxu0 0.0
  %330 = vmatpush2.msra.mxu0 0.0
  %331 = vmatprep.subr.mxu0 0.0
  %332 = vmatpush2.msra.mxu0 0.0
  %333 = vmatprep.subr.mxu0 0.0
  %334 = vmatpush2.msra.mxu0 0.0
  %335 = vmatprep.subr.mxu0 0.0
  %336 = vmatpush2.msra.mxu0 0.0
  %337 = vmatprep.subr.mxu0 0.0
  %338 = vmatpush2.msra.mxu0 0.0
  %339 = vmatprep.subr.mxu0 0.0
  %340 = vmatpush2.msra.mxu0 0.0
  %341 = vmatprep.subr.mxu0 0.0
  %342 = vmatpush2.msra.mxu0 0.0
  %343 = vmatprep.mubr.f32.mxu0 0.0
  %344 = vmatmul.mubr.f32.gmra.mxu0 %v277
  %v345 = vpop.f32.mrf.mxu0
  %v346 = vadd.f32 %v274, %v345
  %v347 = vpop.f32.mrf.mxu0
  %348 = vdwg.mxu0
  %v349 = vtanh.pop %v346
  %350 = vrot.lane.b32.xlu0 %v262, 8
  %v351 = vpop.permute.xlu0 %350
  %v353 = vsel %vm103, %v139, %v351
  %vm354 = vcmask 195584
  %v355 = vsel %vm354, %v353, 0.0
  %356 = vrot.lane.b32.xlu0 %v17, 102
  %v357 = vpop.permute.xlu0 %356
  %358 = vrot.lane.b32.xlu0 %v18, 102
  %v359 = vpop.permute.xlu0 %358
  %360 = vrot.lane.b32.xlu0 %v19, 102
  %v361 = vpop.permute.xlu0 %360
  %362 = vrot.lane.b32.xlu0 %v20, 102
  %v363 = vpop.permute.xlu0 %362
  %364 = vrot.lane.b32.xlu0 %v21, 102
  %v365 = vpop.permute.xlu0 %364
  %371 = vrot.lane.b32.xlu0 %v26, 102
  %v372 = vpop.permute.xlu0 %371
  %v375 = vsel %vm27, %v355, 0
  %377 = vmatprep.subr.mxu0 0.0
  %378 = vmatpush1.msra.mxu0 0.0
  %379 = vmatprep.subr.mxu0 0.0
  %380 = vmatpush1.msra.mxu0 0.0
  %381 = vmatprep.subr.mxu0 0.0
  %382 = vmatpush1.msra.mxu0 0.0
  %383 = vmatprep.subr.mxu0 0.0
  %384 = vmatpush1.msra.mxu0 0.0
  %385 = vmatprep.subr.mxu0 0.0
  %386 = vmatpush1.msra.mxu0 0.0
  %387 = vmatprep.subr.mxu0 0.0
  %388 = vmatpush1.msra.mxu0 0.0
  %389 = vmatprep.subr.mxu0 0.0
  %390 = vmatpush1.msra.mxu0 0.0
  %391 = vmatprep.subr.mxu0 0.0
  %392 = vmatpush1.msra.mxu0 0.0
  %393 = vmatprep.subr.mxu0 0.0
  %394 = vmatpush1.msra.mxu0 0.0
  %395 = vmatprep.subr.mxu0 0.0
  %396 = vmatpush1.msra.mxu0 0.0
  %397 = vmatprep.subr.mxu0 0.0
  %398 = vmatpush1.msra.mxu0 0.0
  %399 = vmatprep.subr.mxu0 0.0
  %400 = vmatpush1.msra.mxu0 %v365
  %401 = vmatprep.subr.mxu0 0.0
  %402 = vmatpush1.msra.mxu0 %v363
  %403 = vmatprep.subr.mxu0 0.0
  %404 = vmatpush1.msra.mxu0 %v361
  %405 = vmatprep.subr.mxu0 0.0
  %406 = vmatpush1.msra.mxu0 %v359
  %407 = vmatprep.subr.mxu0 0.0
  %408 = vmatpush1.msra.mxu0 %v357
  %409 = vmatprep.subr.mxu0 0.0
  %410 = vmatpush2.msra.mxu0 0.0
  %411 = vmatprep.subr.mxu0 0.0
  %412 = vmatpush2.msra.mxu0 0.0
  %413 = vmatprep.subr.mxu0 0.0
  %414 = vmatpush2.msra.mxu0 0.0
  %415 = vmatprep.subr.mxu0 0.0
  %416 = vmatpush2.msra.mxu0 0.0
  %417 = vmatprep.subr.mxu0 0.0
  %418 = vmatpush2.msra.mxu0 0.0
  %419 = vmatprep.subr.mxu0 0.0
  %420 = vmatpush2.msra.mxu0 0.0
  %421 = vmatprep.subr.mxu0 0.0
  %422 = vmatpush2.msra.mxu0 0.0
  %423 = vmatprep.subr.mxu0 0.0
  %424 = vmatpush2.msra.mxu0 0.0
  %425 = vmatprep.subr.mxu0 0.0
  %426 = vmatpush2.msra.mxu0 0.0
  %427 = vmatprep.subr.mxu0 0.0
  %428 = vmatpush2.msra.mxu0 0.0
  %429 = vmatprep.subr.mxu0 0.0
  %430 = vmatpush2.msra.mxu0 0.0
  %431 = vmatprep.subr.mxu0 0.0
  %432 = vmatpush2.msra.mxu0 0.0
  %433 = vmatprep.subr.mxu0 0.0
  %434 = vmatpush2.msra.mxu0 0.0
  %435 = vmatprep.subr.mxu0 0.0
  %436 = vmatpush2.msra.mxu0 0.0
  %437 = vmatprep.subr.mxu0 0.0
  %438 = vmatpush2.msra.mxu0 0.0
  %439 = vmatprep.subr.mxu0 0.0
  %440 = vmatpush2.msra.mxu0 0.0
  %441 = vmatprep.mubr.f32.mxu0 0.0
  %442 = vmatmul.mubr.f32.gmra.mxu0 %v375
  %v443 = vpop.f32.mrf.mxu0
  %v444 = vadd.f32 %v372, %v443
  %v445 = vpop.f32.mrf.mxu0
  %446 = vdwg.mxu0
  %v447 = vtanh.pop %v444
  %v448 = vmul.f32 %v447, %v15
  %v449 = vsel %vm103, %v448, 0.0
  %v450 = vrot.slane %v449, 4
  %v451 = vadd.f32 %v449, %v450
  %v452 = vrot.slane %v451, 2
  %v453 = vadd.f32 %v451, %v452
  %v454 = vrot.slane %v453, 1
  %v455 = vadd.f32 %v453, %v454
  %v456 = vmul.f32 %v455, 0.25
  %v457 = vsub.f32 %v447, %v456
  %v458 = vmul.f32 %v457, %v457
  %v459 = vmul.f32 %v458, %v15
  %v460 = vsel %vm103, %v459, 0.0
  %v461 = vrot.slane %v460, 4
  %v462 = vadd.f32 %v460, %v461
  %v463 = vrot.slane %v462, 2
  %v464 = vadd.f32 %v462, %v463
  %v465 = vrot.slane %v464, 1
  %v466 = vadd.f32 %v464, %v465
  %v467 = vmul.f32 %v466, 0.25
  %v468 = vadd.f32 %v467, 1e-05
  %v469 = vrsqrt.pop %v468
  %v470 = vmul.f32 %v457, %v469
  %v471 = vld [vmem:[%s1 + $0x18] sm:$0xff]
  %473 = vrot.lane.b32.xlu0 %v471, 94
  %v474 = vpop.permute.xlu0 %473
  %476 = vrot.lane.b32.xlu0 %v26, 94
  %v477 = vpop.permute.xlu0 %476
  %v480 = vsel %vm103, %v470, 0
  %482 = vmatprep.subr.mxu0 0.0
  %483 = vmatpush1.msra.mxu0 0.0
  %484 = vmatprep.subr.mxu0 0.0
  %485 = vmatpush1.msra.mxu0 0.0
  %486 = vmatprep.subr.mxu0 0.0
  %487 = vmatpush1.msra.mxu0 0.0
  %488 = vmatprep.subr.mxu0 0.0
  %489 = vmatpush1.msra.mxu0 0.0
  %490 = vmatprep.subr.mxu0 0.0
  %491 = vmatpush1.msra.mxu0 0.0
  %492 = vmatprep.subr.mxu0 0.0
  %493 = vmatpush1.msra.mxu0 0.0
  %494 = vmatprep.subr.mxu0 0.0
  %495 = vmatpush1.msra.mxu0 0.0
  %496 = vmatprep.subr.mxu0 0.0
  %497 = vmatpush1.msra.mxu0 0.0
  %498 = vmatprep.subr.mxu0 0.0
  %499 = vmatpush1.msra.mxu0 0.0
  %500 = vmatprep.subr.mxu0 0.0
  %501 = vmatpush1.msra.mxu0 0.0
  %502 = vmatprep.subr.mxu0 0.0
  %503 = vmatpush1.msra.mxu0 0.0
  %504 = vmatprep.subr.mxu0 0.0
  %505 = vmatpush1.msra.mxu0 0.0
  %506 = vmatprep.subr.mxu0 0.0
  %507 = vmatpush1.msra.mxu0 0.0
  %508 = vmatprep.subr.mxu0 0.0
  %509 = vmatpush1.msra.mxu0 0.0
  %510 = vmatprep.subr.mxu0 0.0
  %511 = vmatpush1.msra.mxu0 0.0
  %512 = vmatprep.subr.mxu0 0.0
  %513 = vmatpush1.msra.mxu0 %v474
  %514 = vmatprep.subr.mxu0 0.0
  %515 = vmatpush2.msra.mxu0 0.0
  %516 = vmatprep.subr.mxu0 0.0
  %517 = vmatpush2.msra.mxu0 0.0
  %518 = vmatprep.subr.mxu0 0.0
  %519 = vmatpush2.msra.mxu0 0.0
  %520 = vmatprep.subr.mxu0 0.0
  %521 = vmatpush2.msra.mxu0 0.0
  %522 = vmatprep.subr.mxu0 0.0
  %523 = vmatpush2.msra.mxu0 0.0
  %524 = vmatprep.subr.mxu0 0.0
  %525 = vmatpush2.msra.mxu0 0.0
  %526 = vmatprep.subr.mxu0 0.0
  %527 = vmatpush2.msra.mxu0 0.0
  %528 = vmatprep.subr.mxu0 0.0
  %529 = vmatpush2.msra.mxu0 0.0
  %530 = vmatprep.subr.mxu0 0.0
  %531 = vmatpush2.msra.mxu0 0.0
  %532 = vmatprep.subr.mxu0 0.0
  %533 = vmatpush2.msra.mxu0 0.0
  %534 = vmatprep.subr.mxu0 0.0
  %535 = vmatpush2.msra.mxu0 0.0
  %536 = vmatprep.subr.mxu0 0.0
  %537 = vmatpush2.msra.mxu0 0.0
  %538 = vmatprep.subr.mxu0 0.0
  %539 = vmatpush2.msra.mxu0 0.0
  %540 = vmatprep.subr.mxu0 0.0
  %541 = vmatpush2.msra.mxu0 0.0
  %542 = vmatprep.subr.mxu0 0.0
  %543 = vmatpush2.msra.mxu0 0.0
  %544 = vmatprep.subr.mxu0 0.0
  %545 = vmatpush2.msra.mxu0 0.0
  %546 = vmatprep.mubr.f32.mxu0 0.0
  %547 = vmatmul.mubr.f32.gmra.mxu0 %v480
  %v548 = vpop.f32.mrf.mxu0
  %v549 = vadd.f32 %v477, %v548
  %v550 = vpop.f32.mrf.mxu0
  %551 = vdwg.mxu0
  %v552 = vtanh.pop %v549
  %553 = vrot.lane.b32.xlu0 %v470, 24
  %v554 = vpop.permute.xlu0 %553
  %v556 = vsel %vm354, %v353, %v554
  %vm557 = vcmask 261120
  %v558 = vsel %vm557, %v556, 0.0
  %559 = vrot.lane.b32.xlu0 %v17, 93
  %v560 = vpop.permute.xlu0 %559
  %561 = vrot.lane.b32.xlu0 %v18, 93
  %v562 = vpop.permute.xlu0 %561
  %563 = vrot.lane.b32.xlu0 %v19, 93
  %v564 = vpop.permute.xlu0 %563
  %565 = vrot.lane.b32.xlu0 %v20, 93
  %v566 = vpop.permute.xlu0 %565
  %567 = vrot.lane.b32.xlu0 %v21, 93
  %v568 = vpop.permute.xlu0 %567
  %574 = vrot.lane.b32.xlu0 %v26, 93
  %v575 = vpop.permute.xlu0 %574
  %v578 = vsel %vm27, %v558, 0
  %580 = vmatprep.subr.mxu0 0.0
  %581 = vmatpush1.msra.mxu0 0.0
  %582 = vmatprep.subr.mxu0 0.0
  %583 = vmatpush1.msra.mxu0 0.0
  %584 = vmatprep.subr.mxu0 0.0
  %585 = vmatpush1.msra.mxu0 0.0
  %586 = vmatprep.subr.mxu0 0.0
  %587 = vmatpush1.msra.mxu0 0.0
  %588 = vmatprep.subr.mxu0 0.0
  %589 = vmatpush1.msra.mxu0 0.0
  %590 = vmatprep.subr.mxu0 0.0
  %591 = vmatpush1.msra.mxu0 0.0
  %592 = vmatprep.subr.mxu0 0.0
  %593 = vmatpush1.msra.mxu0 0.0
  %594 = vmatprep.subr.mxu0 0.0
  %595 = vmatpush1.msra.mxu0 0.0
  %596 = vmatprep.subr.mxu0 0.0
  %597 = vmatpush1.msra.mxu0 0.0
  %598 = vmatprep.subr.mxu0 0.0
  %599 = vmatpush1.msra.mxu0 0.0
  %600 = vmatprep.subr.mxu0 0.0
  %601 = vmatpush1.msra.mxu0 0.0
  %602 = vmatprep.subr.mxu0 0.0
  %603 = vmatpush1.msra.mxu0 %v568
  %604 = vmatprep.subr.mxu0 0.0
  %605 = vmatpush1.msra.mxu0 %v566
  %606 = vmatprep.subr.mxu0 0.0
  %607 = vmatpush1.msra.mxu0 %v564
  %608 = vmatprep.subr.mxu0 0.0
  %609 = vmatpush1.msra.mxu0 %v562
  %610 = vmatprep.subr.mxu0 0.0
  %611 = vmatpush1.msra.mxu0 %v560
  %612 = vmatprep.subr.mxu0 0.0
  %613 = vmatpush2.msra.mxu0 0.0
  %614 = vmatprep.subr.mxu0 0.0
  %615 = vmatpush2.msra.mxu0 0.0
  %616 = vmatprep.subr.mxu0 0.0
  %617 = vmatpush2.msra.mxu0 0.0
  %618 = vmatprep.subr.mxu0 0.0
  %619 = vmatpush2.msra.mxu0 0.0
  %620 = vmatprep.subr.mxu0 0.0
  %621 = vmatpush2.msra.mxu0 0.0
  %622 = vmatprep.subr.mxu0 0.0
  %623 = vmatpush2.msra.mxu0 0.0
  %624 = vmatprep.subr.mxu0 0.0
  %625 = vmatpush2.msra.mxu0 0.0
  %626 = vmatprep.subr.mxu0 0.0
  %627 = vmatpush2.msra.mxu0 0.0
  %628 = vmatprep.subr.mxu0 0.0
  %629 = vmatpush2.msra.mxu0 0.0
  %630 = vmatprep.subr.mxu0 0.0
  %631 = vmatpush2.msra.mxu0 0.0
  %632 = vmatprep.subr.mxu0 0.0
  %633 = vmatpush2.msra.mxu0 0.0
  %634 = vmatprep.subr.mxu0 0.0
  %635 = vmatpush2.msra.mxu0 0.0
  %636 = vmatprep.subr.mxu0 0.0
  %637 = vmatpush2.msra.mxu0 0.0
  %638 = vmatprep.subr.mxu0 0.0
  %639 = vmatpush2.msra.mxu0 0.0
  %640 = vmatprep.subr.mxu0 0.0
  %641 = vmatpush2.msra.mxu0 0.0
  %642 = vmatprep.subr.mxu0 0.0
  %643 = vmatpush2.msra.mxu0 0.0
  %644 = vmatprep.mubr.f32.mxu0 0.0
  %645 = vmatmul.mubr.f32.gmra.mxu0 %v578
  %v646 = vpop.f32.mrf.mxu0
  %v647 = vadd.f32 %v575, %v646
  %v648 = vpop.f32.mrf.mxu0
  %649 = vdwg.mxu0
  %v650 = vtanh.pop %v647
  %v651 = vmul.f32 %v650, %v15
  %v652 = vsel %vm103, %v651, 0.0
  %v653 = vrot.slane %v652, 4
  %v654 = vadd.f32 %v652, %v653
  %v655 = vrot.slane %v654, 2
  %v656 = vadd.f32 %v654, %v655
  %v657 = vrot.slane %v656, 1
  %v658 = vadd.f32 %v656, %v657
  %v659 = vmul.f32 %v658, 0.25
  %v660 = vsub.f32 %v650, %v659
  %v661 = vmul.f32 %v660, %v660
  %v662 = vmul.f32 %v661, %v15
  %v663 = vsel %vm103, %v662, 0.0
  %v664 = vrot.slane %v663, 4
  %v665 = vadd.f32 %v663, %v664
  %v666 = vrot.slane %v665, 2
  %v667 = vadd.f32 %v665, %v666
  %v668 = vrot.slane %v667, 1
  %v669 = vadd.f32 %v667, %v668
  %v670 = vmul.f32 %v669, 0.25
  %v671 = vadd.f32 %v670, 1e-05
  %v672 = vrsqrt.pop %v671
  %v673 = vmul.f32 %v660, %v672
  %674 = vrot.lane.b32.xlu0 %v21, 85
  %v675 = vpop.permute.xlu0 %674
  %677 = vrot.lane.b32.xlu0 %v26, 85
  %v678 = vpop.permute.xlu0 %677
  %v681 = vsel %vm103, %v673, 0
  %683 = vmatprep.subr.mxu0 0.0
  %684 = vmatpush1.msra.mxu0 0.0
  %685 = vmatprep.subr.mxu0 0.0
  %686 = vmatpush1.msra.mxu0 0.0
  %687 = vmatprep.subr.mxu0 0.0
  %688 = vmatpush1.msra.mxu0 0.0
  %689 = vmatprep.subr.mxu0 0.0
  %690 = vmatpush1.msra.mxu0 0.0
  %691 = vmatprep.subr.mxu0 0.0
  %692 = vmatpush1.msra.mxu0 0.0
  %693 = vmatprep.subr.mxu0 0.0
  %694 = vmatpush1.msra.mxu0 0.0
  %695 = vmatprep.subr.mxu0 0.0
  %696 = vmatpush1.msra.mxu0 0.0
  %697 = vmatprep.subr.mxu0 0.0
  %698 = vmatpush1.msra.mxu0 0.0
  %699 = vmatprep.subr.mxu0 0.0
  %700 = vmatpush1.msra.mxu0 0.0
  %701 = vmatprep.subr.mxu0 0.0
  %702 = vmatpush1.msra.mxu0 0.0
  %703 = vmatprep.subr.mxu0 0.0
  %704 = vmatpush1.msra.mxu0 0.0
  %705 = vmatprep.subr.mxu0 0.0
  %706 = vmatpush1.msra.mxu0 0.0
  %707 = vmatprep.subr.mxu0 0.0
  %708 = vmatpush1.msra.mxu0 0.0
  %709 = vmatprep.subr.mxu0 0.0
  %710 = vmatpush1.msra.mxu0 0.0
  %711 = vmatprep.subr.mxu0 0.0
  %712 = vmatpush1.msra.mxu0 0.0
  %713 = vmatprep.subr.mxu0 0.0
  %714 = vmatpush1.msra.mxu0 %v675
  %715 = vmatprep.subr.mxu0 0.0
  %716 = vmatpush2.msra.mxu0 0.0
  %717 = vmatprep.subr.mxu0 0.0
  %718 = vmatpush2.msra.mxu0 0.0
  %719 = vmatprep.subr.mxu0 0.0
  %720 = vmatpush2.msra.mxu0 0.0
  %721 = vmatprep.subr.mxu0 0.0
  %722 = vmatpush2.msra.mxu0 0.0
  %723 = vmatprep.subr.mxu0 0.0
  %724 = vmatpush2.msra.mxu0 0.0
  %725 = vmatprep.subr.mxu0 0.0
  %726 = vmatpush2.msra.mxu0 0.0
  %727 = vmatprep.subr.mxu0 0.0
  %728 = vmatpush2.msra.mxu0 0.0
  %729 = vmatprep.subr.mxu0 0.0
  %730 = vmatpush2.msra.mxu0 0.0
  %731 = vmatprep.subr.mxu0 0.0
  %732 = vmatpush2.msra.mxu0 0.0
  %733 = vmatprep.subr.mxu0 0.0
  %734 = vmatpush2.msra.mxu0 0.0
  %735 = vmatprep.subr.mxu0 0.0
  %736 = vmatpush2.msra.mxu0 0.0
  %737 = vmatprep.subr.mxu0 0.0
  %738 = vmatpush2.msra.mxu0 0.0
  %739 = vmatprep.subr.mxu0 0.0
  %740 = vmatpush2.msra.mxu0 0.0
  %741 = vmatprep.subr.mxu0 0.0
  %742 = vmatpush2.msra.mxu0 0.0
  %743 = vmatprep.subr.mxu0 0.0
  %744 = vmatpush2.msra.mxu0 0.0
  %745 = vmatprep.subr.mxu0 0.0
  %746 = vmatpush2.msra.mxu0 0.0
  %747 = vmatprep.mubr.f32.mxu0 0.0
  %748 = vmatmul.mubr.f32.gmra.mxu0 %v681
  %v749 = vpop.f32.mrf.mxu0
  %v750 = vadd.f32 %v678, %v749
  %v751 = vpop.f32.mrf.mxu0
  %752 = vdwg.mxu0
  %v753 = vtanh.pop %v750
  %754 = vrot.lane.b32.xlu0 %v470, 16
  %v755 = vpop.permute.xlu0 %754
  %757 = vrot.lane.b32.xlu0 %v673, 24
  %v758 = vpop.permute.xlu0 %757
  %v760 = vsel %vm240, %v262, %v755
  %v761 = vsel %vm354, %v760, %v758
  %762 = vrot.lane.b32.xlu0 %v18, 84
  %v763 = vpop.permute.xlu0 %762
  %764 = vrot.lane.b32.xlu0 %v19, 84
  %v765 = vpop.permute.xlu0 %764
  %766 = vrot.lane.b32.xlu0 %v20, 84
  %v767 = vpop.permute.xlu0 %766
  %768 = vrot.lane.b32.xlu0 %v21, 84
  %v769 = vpop.permute.xlu0 %768
  %774 = vrot.lane.b32.xlu0 %v26, 84
  %v775 = vpop.permute.xlu0 %774
  %v778 = vsel %vm557, %v761, 0
  %780 = vmatprep.subr.mxu0 0.0
  %781 = vmatpush1.msra.mxu0 0.0
  %782 = vmatprep.subr.mxu0 0.0
  %783 = vmatpush1.msra.mxu0 0.0
  %784 = vmatprep.subr.mxu0 0.0
  %785 = vmatpush1.msra.mxu0 0.0
  %786 = vmatprep.subr.mxu0 0.0
  %787 = vmatpush1.msra.mxu0 0.0
  %788 = vmatprep.subr.mxu0 0.0
  %789 = vmatpush1.msra.mxu0 0.0
  %790 = vmatprep.subr.mxu0 0.0
  %791 = vmatpush1.msra.mxu0 0.0
  %792 = vmatprep.subr.mxu0 0.0
  %793 = vmatpush1.msra.mxu0 0.0
  %794 = vmatprep.subr.mxu0 0.0
  %795 = vmatpush1.msra.mxu0 0.0
  %796 = vmatprep.subr.mxu0 0.0
  %797 = vmatpush1.msra.mxu0 0.0
  %798 = vmatprep.subr.mxu0 0.0
  %799 = vmatpush1.msra.mxu0 0.0
  %800 = vmatprep.subr.mxu0 0.0
  %801 = vmatpush1.msra.mxu0 0.0
  %802 = vmatprep.subr.mxu0 0.0
  %803 = vmatpush1.msra.mxu0 0.0
  %804 = vmatprep.subr.mxu0 0.0
  %805 = vmatpush1.msra.mxu0 %v769
  %806 = vmatprep.subr.mxu0 0.0
  %807 = vmatpush1.msra.mxu0 %v767
  %808 = vmatprep.subr.mxu0 0.0
  %809 = vmatpush1.msra.mxu0 %v765
  %810 = vmatprep.subr.mxu0 0.0
  %811 = vmatpush1.msra.mxu0 %v763
  %812 = vmatprep.subr.mxu0 0.0
  %813 = vmatpush2.msra.mxu0 0.0
  %814 = vmatprep.subr.mxu0 0.0
  %815 = vmatpush2.msra.mxu0 0.0
  %816 = vmatprep.subr.mxu0 0.0
  %817 = vmatpush2.msra.mxu0 0.0
  %818 = vmatprep.subr.mxu0 0.0
  %819 = vmatpush2.msra.mxu0 0.0
  %820 = vmatprep.subr.mxu0 0.0
  %821 = vmatpush2.msra.mxu0 0.0
  %822 = vmatprep.subr.mxu0 0.0
  %823 = vmatpush2.msra.mxu0 0.0
  %824 = vmatprep.subr.mxu0 0.0
  %825 = vmatpush2.msra.mxu0 0.0
  %826 = vmatprep.subr.mxu0 0.0
  %827 = vmatpush2.msra.mxu0 0.0
  %828 = vmatprep.subr.mxu0 0.0
  %829 = vmatpush2.msra.mxu0 0.0
  %830 = vmatprep.subr.mxu0 0.0
  %831 = vmatpush2.msra.mxu0 0.0
  %832 = vmatprep.subr.mxu0 0.0
  %833 = vmatpush2.msra.mxu0 0.0
  %834 = vmatprep.subr.mxu0 0.0
  %835 = vmatpush2.msra.mxu0 0.0
  %836 = vmatprep.subr.mxu0 0.0
  %837 = vmatpush2.msra.mxu0 0.0
  %838 = vmatprep.subr.mxu0 0.0
  %839 = vmatpush2.msra.mxu0 0.0
  %840 = vmatprep.subr.mxu0 0.0
  %841 = vmatpush2.msra.mxu0 0.0
  %842 = vmatprep.subr.mxu0 0.0
  %843 = vmatpush2.msra.mxu0 0.0
  %844 = vmatprep.mubr.f32.mxu0 0.0
  %845 = vmatmul.mubr.f32.gmra.mxu0 %v778
  %v846 = vpop.f32.mrf.mxu0
  %v847 = vadd.f32 %v775, %v846
  %v848 = vpop.f32.mrf.mxu0
  %849 = vdwg.mxu0
  %v850 = vxor.u32 %v847, 2147483648
  %v851 = vmul.f32 %v850, 1.442695
  %v852 = vpow.pop %v851
  %v853 = vadd.f32 %v852, 1.0
  %v854 = vrcp.pop %v853
  %v855 = vmul.f32 1.0, %v854
  %857 = vrot.lane.b32.xlu0 %v349, 32
  %v858 = vpop.permute.xlu0 %857
  %861 = vrot.lane.b32.xlu0 %v552, 34
  %v862 = vpop.permute.xlu0 %861
  %865 = vrot.lane.b32.xlu0 %v753, 35
  %v866 = vpop.permute.xlu0 %865
  %869 = vrot.lane.b32.xlu0 %v847, 36
  %v870 = vpop.permute.xlu0 %869
  %873 = vrot.lane.b32.xlu0 %v855, 37
  %v874 = vpop.permute.xlu0 %873
  %v876 = vsel %vm557, %v761, %v858
  %vm877 = vcmask 277504
  %v878 = vsel %vm877, %v876, %v862
  %vm879 = vcmask 285696
  %v880 = vsel %vm879, %v878, %v866
  %vm881 = vcmask 293888
  %v882 = vsel %vm881, %v880, %v870
  %vm883 = vcmask 302080
  %v884 = vsel %vm883, %v882, %v874
  %vm885 = vcmask 310272
  %v886 = vsel %vm885, %v884, 0.0
  %887 = vst [vmem:[%s2] sm:$0xff] %v886
  // Predicated region
  $region10: #{genovnn_forward.1} parent=0 // pred_check
    _
  $region11: #{genovnn_forward.1} parent=0 // pred_check_branch
    %889 = sbr.rel (0) target = $region13
  $region12: #{genovnn_forward.1} parent=0 // pred_region
    _
  $region13: #{genovnn_forward.1} parent=0 // pred_fallthru
    _
  // Predicated region
  $region14: #{genovnn_forward.1} parent=0 // pred_check
    _
  $region15: #{genovnn_forward.1} parent=0 // pred_check_branch
    %891 = sbr.rel (0) target = $region17
  $region16: #{genovnn_forward.1} parent=0 // pred_region
    _
  $region17: #{genovnn_forward.1} parent=0 // pred_fallthru
    _

</llo_original>
